<compile_context>
chip_gen: v6e
topology: v6e:2x2x1
jax: 0.10.0
libtpu: 0.0.40
codegen_flags: <defaults>
</compile_context>

<pallas_src>
import functools
import math

import jax
import jax.numpy as jnp
from jax import lax
from jax.experimental import pallas as pl
from jax.experimental.pallas import tpu as pltpu


# ------------------------------ kernels -------------------------------------

def _fmix32(x):
    """murmur3 32-bit finalizer (good avalanche); plain u32 integer ops."""
    x = x ^ (x >> 16)
    x = x * jnp.uint32(0x85EBCA6B)
    x = x ^ (x >> 13)
    x = x * jnp.uint32(0xC2B2AE35)
    x = x ^ (x >> 16)
    return x


def _pe_add_kernel(x_ref, pe_ref, o_ref):
    # Eval / p == 0 path: dropout is identity.
    o_ref[...] = (x_ref[...] + pe_ref[...]).astype(o_ref.dtype)


def _pe_add_dropout_kernel(seed_ref, x_ref, pe_ref, o_ref, *, p):
    y = x_ref[...] + pe_ref[...]                 # broadcasts (tl,E) onto (1,tl,E)
    shape = o_ref.shape
    n_rows, n_cols = shape[-2], shape[-1]

    # Counter-based PRNG: a unique 32-bit counter per output element per call,
    # hashed with a seed-derived key.
    # TODO(synk): cannot reproduce PyTorch's RNG stream bit-for-bit; semantics
    # (Bernoulli keep with prob 1-p, scale by 1/(1-p)) match nn.Dropout.
    step = pl.program_id(0) * pl.num_programs(1) + pl.program_id(1)
    rows = lax.broadcasted_iota(jnp.int32, shape, len(shape) - 2)
    cols = lax.broadcasted_iota(jnp.int32, shape, len(shape) - 1)
    lin = (rows * n_cols + cols).astype(jnp.uint32)
    base = step.astype(jnp.uint32) * jnp.uint32((n_rows * n_cols) & 0xFFFFFFFF)
    key = _fmix32(seed_ref[0].astype(jnp.uint32) ^ jnp.uint32(0x9E3779B9))
    bits = _fmix32(_fmix32(base + lin) ^ key)

    # Keep with probability (1 - p).  Compare in 23-bit space so the result is
    # identical under signed or unsigned comparison lowering.
    thr = jnp.uint32(min(int(round(p * (1 << 23))), (1 << 23) - 1))
    keep = (bits & jnp.uint32(0x7FFFFF)) >= thr
    scale = jnp.asarray(1.0 / (1.0 - p), dtype=y.dtype)
    o_ref[...] = jnp.where(keep, y * scale, jnp.zeros((), y.dtype)).astype(o_ref.dtype)


# ------------------------------ wrapper --------------------------------------

def _pick_block_rows(total_rows, row_bytes, target_bytes, mult):
    """Rows per block: a multiple of `mult` (or all rows when fewer), sized to
    ~target_bytes per block, preferring an exact divisor of total_rows."""
    if total_rows <= mult:
        return total_rows
    t = max(mult, (target_bytes // max(1, row_bytes)) // mult * mult)
    t = min(t, total_rows - total_rows % mult)
    d = t
    while d > mult and total_rows % d:
        d -= mult
    return d if total_rows % d == 0 else t


class PositionalEncodingPallas:
    """x + PE[:L] followed by dropout(p), matching the PyTorch module."""

    # ~2 MiB per operand block: 3 operands x 2 pipeline buffers = 12 MiB fits
    # every generation's default scoped-VMEM (16/32/32 MiB) while amortizing
    # the ~0.35 us per-grid-step overhead.  Raise to ~4 MiB on v6e/v7x when
    # tuning (and set vmem_limit_bytes accordingly).
    _BLOCK_BYTES = 2 << 20

    def __init__(self, dim_embed, dropout=0.3, max_len=1024):
        self.E = int(dim_embed)
        self.p = float(dropout)
        self.max_len = int(max_len)

        # Same PE table construction as the PyTorch module (host side, once).
        position = jnp.arange(self.max_len, dtype=jnp.float32)[:, None]
        div_term = jnp.exp(
            jnp.arange(0, self.E, 2, dtype=jnp.float32)
            * (-math.log(10000.0) / self.E))
        ang = position * div_term                              # (max_len, E/2)
        pe = jnp.zeros((self.max_len, self.E), jnp.float32)
        pe = pe.at[:, 0::2].set(jnp.sin(ang))
        pe = pe.at[:, 1::2].set(jnp.cos(ang))
        self.pe = pe                                           # (max_len, E)
        self._pe_cache = {jnp.dtype(jnp.float32): pe}

    def _pe_as(self, dtype):
        dtype = jnp.dtype(dtype)
        if dtype not in self._pe_cache:
            self._pe_cache[dtype] = self.pe.astype(dtype)      # cast once, cached
        return self._pe_cache[dtype]

    def __call__(self, x, *, training=False, seed=0):
        B, L, E = x.shape
        assert E == self.E, f"dim_embed mismatch: {E} vs {self.E}"
        assert L <= self.max_len, f"sequence length {L} > max_len {self.max_len}"
        dtype = jnp.dtype(x.dtype)
        itemsize = dtype.itemsize
        sub = max(8, 32 // itemsize)              # sublane multiple for this dtype
        use_dropout = bool(training) and self.p > 0.0
        if use_dropout and self.p >= 1.0:
            return jnp.zeros_like(x)              # nn.Dropout(p=1) zeroes everything

        pe = self._pe_as(dtype)

        # ----- layout / tiling selection -------------------------------------
        g = 128 // math.gcd(E, 128)               # positions per lane-dense row
        lane_dense = (L % (sub * g) == 0)
        if lane_dense:
            # Flatten g consecutive positions into one row of width g*E (a
            # multiple of 128 lanes): full-width stores even for small E.
            # Pure contiguous reshapes -> no data movement.
            W = g * E
            rows = L // g                         # rows per batch (multiple of sub)
            R = _pick_block_rows(rows, W * itemsize, self._BLOCK_BYTES, sub)
            spb = rows // R                       # seq blocks per batch
            x_in = x.reshape(B * rows, W)
            if self.max_len % g == 0:
                pe_in = pe.reshape(self.max_len // g, W)       # free reshape, no slice
            else:
                pe_in = pe[:L].reshape(rows, W)
            grid = (spb, B)                       # seq tiles outer, batch inner
            x_map = lambda i, b, *_: (b * spb + i, 0)
            pe_map = lambda i, b, *_: (i, 0)      # independent of b -> PE DMA elided
            x_spec = pl.BlockSpec((R, W), x_map)
            pe_spec = pl.BlockSpec((R, W), pe_map)
            out_spec = pl.BlockSpec((R, W), x_map)
            out_shape = jax.ShapeDtypeStruct((B * rows, W), dtype)
        else:
            # Fallback 3-D tiling (last dim = full E; valid for any E).
            tl = _pick_block_rows(L, E * itemsize, self._BLOCK_BYTES, sub)
            spb = pl.cdiv(L, tl)
            x_in = x
            pe_in = pe                            # full table; no [:L] slice copy
            grid = (spb, B)
            x_map = lambda i, b, *_: (b, i, 0)
            pe_map = lambda i, b, *_: (i, 0)      # independent of b -> PE DMA elided
            x_spec = pl.BlockSpec((1, tl, E), x_map)
            pe_spec = pl.BlockSpec((tl, E), pe_map)
            out_spec = pl.BlockSpec((1, tl, E), x_map)
            out_shape = jax.ShapeDtypeStruct((B, L, E), dtype)

        # Seq-tile axis "parallel" (megacore shards it); batch axis "arbitrary"
        # so each core walks batches in order and keeps its PE block resident.
        cparams = pltpu.CompilerParams(
            dimension_semantics=("parallel", "arbitrary"))

        if use_dropout:
            kernel = functools.partial(_pe_add_dropout_kernel, p=self.p)
            out = pl.pallas_call(
                kernel,
                out_shape=out_shape,
                grid_spec=pltpu.PrefetchScalarGridSpec(
                    num_scalar_prefetch=1,
                    grid=grid,
                    in_specs=[x_spec, pe_spec],
                    out_specs=out_spec),
                compiler_params=cparams,
            )(jnp.asarray([seed], jnp.int32), x_in, pe_in)
        else:
            # Eval path: no seed / no scalar prefetch at all.
            out = pl.pallas_call(
                _pe_add_kernel,
                out_shape=out_shape,
                grid=grid,
                in_specs=[x_spec, pe_spec],
                out_specs=out_spec,
                compiler_params=cparams,
            )(x_in, pe_in)

        return out.reshape(B, L, E)


# ------------------------------ demo / checks --------------------------------

if __name__ == "__main__":
    p = 0.3
    E = 32
    module = PositionalEncodingPallas(E, dropout=p, max_len=1024)

    def reference(x):
        return x + module.pe[None, :x.shape[1], :].astype(x.dtype)

    # Case 1: lane-dense 2-D path (E=32 -> g=4, needs L % 32 == 0).
    B, L = 2, 64
    x1 = jax.random.normal(jax.random.PRNGKey(0), (B, L, E), jnp.float32)
    y1 = jax.block_until_ready(module(x1, training=False))
    assert y1.shape == (B, L, E) and y1.dtype == x1.dtype
    assert jnp.allclose(y1, reference(x1), atol=1e-5, rtol=1e-5)

    # Case 2: fallback 3-D path (L=8 is not a multiple of 32).
    B2, L2 = 2, 8
    x2 = jax.random.normal(jax.random.PRNGKey(1), (B2, L2, E), jnp.float32)
    y2 = jax.block_until_ready(module(x2, training=False))
    assert y2.shape == (B2, L2, E) and y2.dtype == x2.dtype
    assert jnp.allclose(y2, reference(x2), atol=1e-5, rtol=1e-5)

    # Case 3: training path. Dropped entries are exactly 0; kept entries equal
    # (x + pe) / (1 - p); drop fraction is plausible.
    y3 = jax.block_until_ready(module(x1, training=True, seed=1234))
    expected_kept = reference(x1) / (1.0 - p)
    ok = jnp.where(y3 == 0.0, True,
                   jnp.isclose(y3, expected_kept, atol=1e-5, rtol=1e-5))
    assert bool(ok.all())
    drop_frac = float(jnp.mean((y3 == 0.0).astype(jnp.float32)))
    assert 0.15 < drop_frac < 0.45, f"implausible dropout rate {drop_frac}"

    print("KERNEL_OK")
</pallas_src>

<mosaic_0001>
module attributes {stable_mosaic.version = 11 : i64} {
  func.func @_pe_add_kernel(%arg0: i32, %arg1: i32, %arg2: memref<16x128xf32, #tpu.memory_space<vmem>>, %arg3: memref<16x128xf32, #tpu.memory_space<vmem>>, %arg4: memref<16x128xf32, #tpu.memory_space<vmem>>) attributes {dimension_semantics = [#tpu.dimension_semantics<parallel>, #tpu.dimension_semantics<arbitrary>], iteration_bounds = array<i64: 1, 2>, scalar_prefetch = 0 : i64, scratch_operands = 0 : i64, tpu.core_type = #tpu.core_type<tc>, window_params = [{transform_indices = @transform_0, window_bounds = array<i64: 16, 128>}, {transform_indices = @transform_1, window_bounds = array<i64: 16, 128>}, {transform_indices = @transform_2, window_bounds = array<i64: 16, 128>}]} {
    %c0 = arith.constant 0 : index
    %c0_0 = arith.constant 0 : index
    %0 = vector.load %arg2[%c0, %c0_0] : memref<16x128xf32, #tpu.memory_space<vmem>>, vector<16x128xf32>
    %c0_1 = arith.constant 0 : index
    %c0_2 = arith.constant 0 : index
    %1 = vector.load %arg3[%c0_1, %c0_2] : memref<16x128xf32, #tpu.memory_space<vmem>>, vector<16x128xf32>
    %2 = arith.addf %0, %1 : vector<16x128xf32>
    %c0_3 = arith.constant 0 : index
    %c0_4 = arith.constant 0 : index
    %3 = vector.load %arg4[%c0_3, %c0_4] : memref<16x128xf32, #tpu.memory_space<vmem>>, vector<16x128xf32>
    tpu.vector_store %arg4[%c0_3, %c0_4], %2 {strides = array<i32>} : memref<16x128xf32, #tpu.memory_space<vmem>>, vector<16x128xf32>,
    return
  }
  func.func @transform_0(%arg0: i32, %arg1: i32) -> (i32, i32) {
    %c1_i32 = arith.constant 1 : i32
    %0 = arith.muli %arg1, %c1_i32 : i32
    %1 = arith.addi %0, %arg0 : i32
    %c0_i32 = arith.constant 0 : i32
    %c0_i32_0 = arith.constant 0 : i32
    return %1, %c0_i32 : i32, i32
  }
  func.func @transform_1(%arg0: i32, %arg1: i32) -> (i32, i32) {
    %c0_i32 = arith.constant 0 : i32
    %c0_i32_0 = arith.constant 0 : i32
    return %arg0, %c0_i32 : i32, i32
  }
  func.func @transform_2(%arg0: i32, %arg1: i32) -> (i32, i32) {
    %c1_i32 = arith.constant 1 : i32
    %0 = arith.muli %arg1, %c1_i32 : i32
    %1 = arith.addi %0, %arg0 : i32
    %c0_i32 = arith.constant 0 : i32
    %c0_i32_0 = arith.constant 0 : i32
    return %1, %c0_i32 : i32, i32
  }
}

</mosaic_0001>

<llo_original>
// kernel: tpu_custom_call.1
$region0: #{tpu_custom_call.1}
  #allocation0 [shape = 'u32[]', space=smem, size = 0x4, offset = 0x4, fixed_abs, tag = 'smem constant byte address 0x4 - core index']
  #allocation1 [shape = 'u32[144,128]{1,0:T(1,128)}', space=vmem, size = 0x12000, scoped, tag = 'internal scratch']
  %s0 = inlined_call_operand.hbm [shape: f32[32,128], index: 0, kind: input, shape index: {}]
  %s1 = inlined_call_operand.hbm [shape: f32[256,128], index: 1, kind: input, shape index: {}]
  %s2 = inlined_call_operand.hbm [shape: f32[32,128], index: 2, kind: output, shape index: {}]
  %s3 = sld [smem:[#allocation0]]
  $region49: #{tpu_custom_call.1} parent=0
    _
  %s5 = ssub.s32 1, %s3
  %s6 = scalar_select 0, %s5, %s3
  $region1: #{tpu_custom_call.1} parent=0
    #allocation2 [shape = 'u8[16384]{0}', space=vmem, size = 0x4000, scoped, tag = 'input window, operand 0']
    #allocation3 [shape = 's32[2]{0}', space=sflag, size = 0x8, scoped, tag = 'scoped memory for tpu_custom_call.1']
    #allocation4 [shape = 's32[2]{0}', space=sflag, size = 0x8, scoped, tag = 'scoped memory for tpu_custom_call.1']
    #allocation5 [shape = 'u8[8192]{0}', space=vmem, size = 0x2000, scoped, tag = 'input window, operand 1, single buffered']
    #allocation6 [shape = 's32[1]{0}', space=sflag, size = 0x4, scoped, tag = 'scoped memory for tpu_custom_call.1']
    #allocation7 [shape = 'u8[16384]{0}', space=vmem, size = 0x4000, scoped, tag = 'output window, operand 0']
    %7 = vsyncpa [#allocation3], 0
    %s8 = scalar_lea.sflag [#allocation3], 1
    %9 = vsyncpa %s8, 0
    %10 = vsyncpa [#allocation6], 0
    %11 = vsyncpa [#allocation4], 0
    %s12 = scalar_lea.sflag [#allocation4], 1
    %13 = vsyncpa %s12, 0
    loop: start=0, step=1, limit=4
    $region2: #{tpu_custom_call.1} parent=1 // loop_pre_header
      _
    $region3: #{tpu_custom_call.1} parent=1 // loop_header
      %s15 = sphi 0, %s19
      %p16 = scmp.ge.s32.totalorder %s15, 4
      %s22 = sphi 0, %s34
      %s23 = sphi 0, %s30
      %s24 = sphi 0, %s22
      %s25 = sphi 0, %s23
      %s26 = sphi 0, %s24
      %s27 = sphi 0, %s25
      %s39 = sphi 0, %s41
      %s42 = sphi 0, %s39
      %s43 = sphi 0, %s42
      %s59 = sphi 0, %s43
      %s65 = sphi 0, %s67
      %s68 = sphi 0, %s65
      %s69 = sphi 0, %s68
      %s85 = sphi 0, %s69
      %s93 = sphi 0, %s95
      %s96 = sphi 0, %s93
      %s97 = sphi 0, %s96
      %s113 = sphi 0, %s97
    $region4: #{tpu_custom_call.1} parent=1 // loop_header_branch
      %18 = sbr.rel (%p16) target = $region8
    $region5: #{tpu_custom_call.1} parent=1 // loop_body
      %s20 = ssub.s32 %s15, 1
      %s21 = ssub.s32 %s15, 2
      %s28 = sadd.s32 1, %s23
      %p29 = scmp.ge.s32.totalorder %s28, 2
      %s30 = scalar_select %p29, 0, %s28
      %s31 = sadd.s32 1, %s22
      %s32 = scalar_select %p29, %s31, %s22
      %p33 = scmp.ge.s32.totalorder %s32, 1
      %s34 = scalar_select %p33, 0, %s32
      %s35 = sadd.s32 %s23, %s22
      %s36 = sadd.s32 %s30, %s34
      %s37 = ssub.s32 %s35, %s36
      %p38 = scmp.eq.s32.totalorder %s37, 0
      %s40 = sadd.s32 %s39, 1
      %s41 = scalar_select %p38, %s39, %s40
      %p44 = pneg %p38
      %p45 = scmp.eq.s32.totalorder %s15, 1
      %p46 = por %p44, %p45
      %p47 = scmp.ne.s32.totalorder %s39, %s42
      %p48 = scmp.eq.s32.totalorder %s15, 0
      %p49 = por %p47, %p48
      %p50 = scmp.ne.s32.totalorder %s39, %s42
      %p51 = scmp.eq.s32.totalorder %s20, 1
      %p52 = por %p50, %p51
      %p53 = scmp.ne.s32.totalorder %s42, %s43
      %p54 = scmp.eq.s32.totalorder %s20, 0
      %p55 = por %p53, %p54
      %p56 = scmp.ne.s32.totalorder %s42, %s43
      %p57 = scmp.eq.s32.totalorder %s21, 1
      %p58 = por %p56, %p57
      %p60 = scmp.ne.s32.totalorder %s43, %s59
      %p61 = scmp.eq.s32.totalorder %s21, 0
      %p62 = por %p60, %p61
      %s63 = ssub.s32 %s22, %s34
      %p64 = scmp.eq.s32.totalorder %s63, 0
      %s66 = sadd.s32 %s65, 1
      %s67 = scalar_select %p64, %s65, %s66
      %p70 = pneg %p64
      %p71 = scmp.eq.s32.totalorder %s15, 1
      %p72 = por %p70, %p71
      %p73 = scmp.ne.s32.totalorder %s65, %s68
      %p74 = scmp.eq.s32.totalorder %s15, 0
      %p75 = por %p73, %p74
      %p76 = scmp.ne.s32.totalorder %s65, %s68
      %p77 = scmp.eq.s32.totalorder %s20, 1
      %p78 = por %p76, %p77
      %p79 = scmp.ne.s32.totalorder %s68, %s69
      %p80 = scmp.eq.s32.totalorder %s20, 0
      %p81 = por %p79, %p80
      %p82 = scmp.ne.s32.totalorder %s68, %s69
      %p83 = scmp.eq.s32.totalorder %s21, 1
      %p84 = por %p82, %p83
      %p86 = scmp.ne.s32.totalorder %s69, %s85
      %p87 = scmp.eq.s32.totalorder %s21, 0
      %p88 = por %p86, %p87
      %s89 = sadd.s32 %s23, %s22
      %s90 = sadd.s32 %s30, %s34
      %s91 = ssub.s32 %s89, %s90
      %p92 = scmp.eq.s32.totalorder %s91, 0
      %s94 = sadd.s32 %s93, 1
      %s95 = scalar_select %p92, %s93, %s94
      %p98 = pneg %p92
      %p99 = scmp.eq.s32.totalorder %s15, 1
      %p100 = por %p98, %p99
      %p101 = scmp.ne.s32.totalorder %s93, %s96
      %p102 = scmp.eq.s32.totalorder %s15, 0
      %p103 = por %p101, %p102
      %p104 = scmp.ne.s32.totalorder %s93, %s96
      %p105 = scmp.eq.s32.totalorder %s20, 1
      %p106 = por %p104, %p105
      %p107 = scmp.ne.s32.totalorder %s96, %s97
      %p108 = scmp.eq.s32.totalorder %s20, 0
      %p109 = por %p107, %p108
      %p110 = scmp.ne.s32.totalorder %s96, %s97
      %p111 = scmp.eq.s32.totalorder %s21, 1
      %p112 = por %p110, %p111
      %p114 = scmp.ne.s32.totalorder %s97, %s113
      %p115 = scmp.eq.s32.totalorder %s21, 0
      %p116 = por %p114, %p115
      %p117 = scmp.le.s32.totalorder 1, %s15
      %p118 = scmp.lt.s32.totalorder %s15, 3
      %p119 = pnand %p117, %p118
      %p120 = pneg %p119
      // Predicated region
      $region9: #{tpu_custom_call.1} parent=5 // pred_check
        _
      $region10: #{tpu_custom_call.1} parent=5 // pred_check_branch
        %122 = sbr.rel (%p119) target = $region12
      $region11: #{tpu_custom_call.1} parent=5 // pred_region
        %s123 = ssub.s32 %s15, 1
        // Predicated region
        $region13: #{tpu_custom_call.1} parent=11 // pred_check
          %p124 = pneg %p81
        $region14: #{tpu_custom_call.1} parent=11 // pred_check_branch
          %126 = sbr.rel (%p124) target = $region16
        $region15: #{tpu_custom_call.1} parent=11 // pred_region
          %s127 = smul.u32 2, %s24
          %s129 = ssub.s32 256, 256
          %130 = vsyncadd [#allocation6], %s129
          %s131 = smul.addr %s127, 128
          %s132 = scalar_lea.hbm %s1, %s131
          %s133 = sshll.u32 [#allocation5], 4
          %s134 = int_to_ptr.vmem [resolvable:$true] %s133
          %139 = dma.hbm_to_vmem [thread:$0]  %s132, 256, %s134, [#allocation6], 128, 128, 8
        $region16: #{tpu_custom_call.1} parent=11 // pred_fallthru
          _
      $region12: #{tpu_custom_call.1} parent=5 // pred_fallthru
        _
      %p140 = scmp.lt.s32.totalorder %s15, 2
      // Predicated region
      $region17: #{tpu_custom_call.1} parent=5 // pred_check
        %p141 = pneg %p140
      $region18: #{tpu_custom_call.1} parent=5 // pred_check_branch
        %143 = sbr.rel (%p141) target = $region20
      $region19: #{tpu_custom_call.1} parent=5 // pred_region
        // Predicated region
        $region21: #{tpu_custom_call.1} parent=19 // pred_check
          %p144 = pneg %p49
        $region22: #{tpu_custom_call.1} parent=19 // pred_check_branch
          %146 = sbr.rel (%p144) target = $region24
        $region23: #{tpu_custom_call.1} parent=19 // pred_region
          %s147 = sand.u32 %s39, 1
          %s148 = scalar_lea.sflag [#allocation3], %s147
          %s149 = sand.u32 %s39, 1
          %s150 = smul.addr %s149, 16
          %s151 = scalar_lea.vmem [#allocation2], %s150
          %s152 = sadd.s32 %s23, %s22
          %s153 = smul.u32 2, %s152
          %s155 = ssub.s32 256, 256
          %156 = vsyncadd %s148, %s155
          %s157 = smul.addr %s153, 128
          %s158 = scalar_lea.hbm %s0, %s157
          %s159 = sshll.u32 %s151, 4
          %s160 = int_to_ptr.vmem [resolvable:$true] %s159
          %165 = dma.hbm_to_vmem [thread:$0]  %s158, 256, %s160, %s148, 128, 128, 8
        $region24: #{tpu_custom_call.1} parent=19 // pred_fallthru
          _
      $region20: #{tpu_custom_call.1} parent=5 // pred_fallthru
        _
      %p166 = scmp.le.s32.totalorder 1, %s15
      %p167 = scmp.lt.s32.totalorder %s15, 3
      %p168 = pnand %p166, %p167
      %p169 = pneg %p168
      // Predicated region
      $region25: #{tpu_custom_call.1} parent=5 // pred_check
        _
      $region26: #{tpu_custom_call.1} parent=5 // pred_check_branch
        %171 = sbr.rel (%p168) target = $region28
      $region27: #{tpu_custom_call.1} parent=5 // pred_region
        %s172 = ssub.s32 %s15, 1
        %s173 = sand.u32 %s42, 1
        %s174 = scalar_lea.sflag [#allocation3], %s173
        %s175 = sand.u32 %s42, 1
        %s176 = smul.addr %s175, 16
        %s177 = scalar_lea.vmem [#allocation2], %s176
        // Predicated region
        $region29: #{tpu_custom_call.1} parent=27 // pred_check
          %p178 = pneg %p55
        $region30: #{tpu_custom_call.1} parent=27 // pred_check_branch
          %180 = sbr.rel (%p178) target = $region32
        $region31: #{tpu_custom_call.1} parent=27 // pred_region
          %181 = dma.done %s174, 256
        $region32: #{tpu_custom_call.1} parent=27 // pred_fallthru
          _
        // Predicated region
        $region33: #{tpu_custom_call.1} parent=27 // pred_check
          %p182 = pneg %p81
        $region34: #{tpu_custom_call.1} parent=27 // pred_check_branch
          %184 = sbr.rel (%p182) target = $region36
        $region35: #{tpu_custom_call.1} parent=27 // pred_region
          %185 = dma.done [#allocation6], 256
        $region36: #{tpu_custom_call.1} parent=27 // pred_fallthru
          _
        %s186 = sand.u32 %s42, 1
        %s187 = scalar_lea.sflag [#allocation3], %s186
        %s188 = sand.u32 %s42, 1
        %s189 = smul.addr %s188, 16
        %s190 = scalar_lea.vmem [#allocation2], %s189
        %p191 = pneg %p55
        %p192 = pneg %p52
        %p193 = pneg %p81
        %p194 = pneg %p78
        %p195 = pneg %p109
        %p196 = pneg %p106
        %s197 = sand.u32 %s96, 1
        %s198 = scalar_lea.sflag [#allocation4], %s197
        %s199 = sand.u32 %s96, 1
        %s200 = smul.addr %s199, 16
        %s201 = scalar_lea.vmem [#allocation7], %s200
        %s202 = sadd.s32 %s25, %s24
        %s203 = smul.u32 2, %s202
        %s204 = smul.u32 2, %s24
        %s205 = sadd.s32 %s25, %s24
        %s206 = smul.u32 2, %s205
        %v207 = vld [vmem:[%s177] sm:$0xff]
        %v208 = vld [vmem:[%s177 + $0x8] sm:$0xff]
        %v209 = vld [vmem:[#allocation5] sm:$0xff]
        %v210 = vld [vmem:[#allocation5 + $0x8] sm:$0xff]
        %v211 = vadd.f32 %v207, %v209
        %v212 = vadd.f32 %v208, %v210
        %213 = vst [vmem:[%s201] sm:$0xff] %v211
        %214 = vst [vmem:[%s201 + $0x8] sm:$0xff] %v212
        %s215 = sand.u32 %s96, 1
        %s216 = scalar_lea.sflag [#allocation4], %s215
        %s217 = sand.u32 %s96, 1
        %s218 = smul.addr %s217, 16
        %s219 = scalar_lea.vmem [#allocation7], %s218
        // Predicated region
        $region37: #{tpu_custom_call.1} parent=27 // pred_check
          %p220 = pneg %p106
        $region38: #{tpu_custom_call.1} parent=27 // pred_check_branch
          %222 = sbr.rel (%p220) target = $region40
        $region39: #{tpu_custom_call.1} parent=27 // pred_region
          %s223 = sadd.s32 %s25, %s24
          %s224 = smul.u32 2, %s223
          %s226 = ssub.s32 256, 256
          %227 = vsyncadd %s216, %s226
          %s228 = smul.addr %s224, 128
          %s229 = scalar_lea.hbm %s2, %s228
          %s230 = sshll.u32 %s219, 4
          %s231 = int_to_ptr.vmem [resolvable:$true] %s230
          %236 = dma.vmem_to_hbm [thread:$0]  %s231, 256, %s229, %s216, 128, 128, 8
        $region40: #{tpu_custom_call.1} parent=27 // pred_fallthru
          _
      $region28: #{tpu_custom_call.1} parent=5 // pred_fallthru
        _
      %p237 = scmp.le.s32.totalorder 2, %s15
      // Predicated region
      $region41: #{tpu_custom_call.1} parent=5 // pred_check
        %p238 = pneg %p237
      $region42: #{tpu_custom_call.1} parent=5 // pred_check_branch
        %240 = sbr.rel (%p238) target = $region44
      $region43: #{tpu_custom_call.1} parent=5 // pred_region
        %s241 = ssub.s32 %s15, 2
        // Predicated region
        $region45: #{tpu_custom_call.1} parent=43 // pred_check
          %p242 = pneg %p112
        $region46: #{tpu_custom_call.1} parent=43 // pred_check_branch
          %244 = sbr.rel (%p242) target = $region48
        $region47: #{tpu_custom_call.1} parent=43 // pred_region
          %s245 = sand.u32 %s97, 1
          %s246 = scalar_lea.sflag [#allocation4], %s245
          %s247 = sand.u32 %s97, 1
          %s248 = smul.addr %s247, 16
          %s249 = scalar_lea.vmem [#allocation7], %s248
          %250 = dma.done %s246, 256
        $region48: #{tpu_custom_call.1} parent=43 // pred_fallthru
          _
      $region44: #{tpu_custom_call.1} parent=5 // pred_fallthru
        _
    $region6: #{tpu_custom_call.1} parent=1 // loop_footer
      %s19 = sadd.s32 1, %s15
    $region7: #{tpu_custom_call.1} parent=1 // loop_footer_branch
      %14 = sbr.rel target = $region3
    $region8: #{tpu_custom_call.1} parent=1 // loop_exit
      _
    %251 = vsyncpa [#allocation3], 1
    %s252 = scalar_lea.sflag [#allocation3], 1
    %253 = vsyncpa %s252, 1
    %254 = vsyncpa [#allocation6], 1
    %255 = vsyncpa [#allocation4], 1
    %s256 = scalar_lea.sflag [#allocation4], 1
    %257 = vsyncpa %s256, 1

</llo_original>
